<compile_context>
chip_gen: v7x
topology: tpu7x:2x2x1
jax: 0.10.0
libtpu: 0.0.40
codegen_flags: <defaults>
</compile_context>

<pallas_src>
import functools

import jax
import jax.numpy as jnp
from jax import lax
from jax.experimental import pallas as pl
from jax.experimental.pallas import tpu as pltpu


def _linear_kernel_2d(x_ref, w_ref, o_ref):
    """Single-shot (tm, tn) output tile: whole K reduction in one dot.

    x_ref: (tm, K)  activation tile
    w_ref: (tn, K)  weight tile in PyTorch (out_dim, input_dim) layout
    o_ref: (tm, tn) output tile
    """
    o_ref[...] = lax.dot_general(
        x_ref[...],
        w_ref[...],
        dimension_numbers=(((1,), (1,)), ((), ())),
        preferred_element_type=jnp.float32,
    ).astype(o_ref.dtype)


def _linear_kernel_3d(x_ref, w_ref, o_ref, acc_ref):
    """One (tm, tn) output tile; accumulates over the K grid axis.

    x_ref:   (tm, tk)  activation tile
    w_ref:   (tn, tk)  weight tile in PyTorch (out_dim, input_dim) layout
    o_ref:   (tm, tn)  output tile
    acc_ref: (tm, tn)  f32 accumulator scratch (lives across K steps)
    """

    @pl.when(pl.program_id(2) == 0)
    def _():
        acc_ref[...] = jnp.zeros_like(acc_ref)

    # Contract x dim 1 with w dim 1: (tm, tk) x (tn, tk) -> (tm, tn).
    # This is x @ W.T with the transpose handled natively by the MXU.
    acc_ref[...] += lax.dot_general(
        x_ref[...],
        w_ref[...],
        dimension_numbers=(((1,), (1,)), ((), ())),
        preferred_element_type=jnp.float32,
    )

    @pl.when(pl.program_id(2) == pl.num_programs(2) - 1)
    def _():
        o_ref[...] = acc_ref[...].astype(o_ref.dtype)


def _round_up(n, m):
    return ((n + m - 1) // m) * m


@functools.partial(jax.jit, static_argnames=("tm", "tn", "tk"))
def custom_linear_et_noisy_forward(x, weight, *, tm=256, tn=256, tk=512):
    """Forward of CustomLinearETNoisy: out = x @ weight.T (no bias).

    x:      (batch, input_dim) float32
    weight: (out_dim, input_dim) float32 (PyTorch nn.Linear weight layout)
    returns (batch, out_dim) float32
    """
    batch, input_dim = x.shape
    out_dim, in_dim_w = weight.shape
    assert in_dim_w == input_dim, "weight/input dim mismatch"

    # Pad to tile-aligned shapes. Zero padding does not change the matmul
    # result; padding N up to a multiple of 128 makes the kernel's output
    # stores lane-dense even when out_dim is small (e.g. 16).
    m_pad = _round_up(batch, 8)
    k_pad = _round_up(input_dim, 128)
    n_pad = _round_up(out_dim, 128)

    tm = min(tm, m_pad)  # multiple of 8   (sublane)
    tn = min(tn, n_pad)  # multiple of 128 (lane)
    tk = min(tk, k_pad)  # multiple of 128 (lane)

    m_pad = _round_up(m_pad, tm)
    n_pad = _round_up(n_pad, tn)
    k_pad = _round_up(k_pad, tk)

    x_p = x
    if (m_pad, k_pad) != (batch, input_dim):
        x_p = jnp.pad(x, ((0, m_pad - batch), (0, k_pad - input_dim)))
    w_p = weight
    if (n_pad, k_pad) != (out_dim, input_dim):
        w_p = jnp.pad(weight, ((0, n_pad - out_dim), (0, k_pad - input_dim)))

    cost = pl.CostEstimate(
        flops=2 * m_pad * n_pad * k_pad,
        transcendentals=0,
        bytes_accessed=(
            m_pad * k_pad * x.dtype.itemsize
            + n_pad * k_pad * weight.dtype.itemsize
            + m_pad * n_pad * x.dtype.itemsize
        ),
    )

    if k_pad <= tk:
        # Whole K reduction fits in one tile: 2-D grid, no accumulator
        # scratch, no output revisit, single MXU dot per output tile.
        grid = (m_pad // tm, n_pad // tn)
        out_p = pl.pallas_call(
            _linear_kernel_2d,
            out_shape=jax.ShapeDtypeStruct((m_pad, n_pad), x.dtype),
            grid_spec=pltpu.PrefetchScalarGridSpec(
                num_scalar_prefetch=0,
                grid=grid,
                in_specs=[
                    pl.BlockSpec((tm, k_pad), lambda i, j: (i, 0)),
                    pl.BlockSpec((tn, k_pad), lambda i, j: (j, 0)),
                ],
                out_specs=pl.BlockSpec((tm, tn), lambda i, j: (i, j)),
            ),
            compiler_params=pltpu.CompilerParams(
                dimension_semantics=("parallel", "parallel"),
            ),
            cost_estimate=cost,
        )(x_p, w_p)
    else:
        # Large K: tile the reduction over the last ("arbitrary") grid axis
        # with an f32 VMEM accumulator that lives across K steps.
        grid = (m_pad // tm, n_pad // tn, k_pad // tk)
        out_p = pl.pallas_call(
            _linear_kernel_3d,
            out_shape=jax.ShapeDtypeStruct((m_pad, n_pad), x.dtype),
            grid_spec=pltpu.PrefetchScalarGridSpec(
                num_scalar_prefetch=0,
                grid=grid,
                in_specs=[
                    # x tile: (tm, tk) at block (i, k)
                    pl.BlockSpec((tm, tk), lambda i, j, k: (i, k)),
                    # weight tile (PyTorch layout (out_dim, input_dim)):
                    # (tn, tk) at block (j, k)
                    pl.BlockSpec((tn, tk), lambda i, j, k: (j, k)),
                ],
                out_specs=pl.BlockSpec((tm, tn), lambda i, j, k: (i, j)),
                scratch_shapes=[pltpu.VMEM((tm, tn), jnp.float32)],
            ),
            compiler_params=pltpu.CompilerParams(
                dimension_semantics=("parallel", "parallel", "arbitrary"),
            ),
            cost_estimate=cost,
        )(x_p, w_p)

    return out_p[:batch, :out_dim]


if __name__ == "__main__":
    # Deterministic synthetic setup (no checkpoint loading).
    key = jax.random.PRNGKey(0)
    k_x, k_w = jax.random.split(key)

    batch = 8
    input_dim = 32
    out_dim = 16

    # TODO(synk): exact orthogonal/kaiming/sparse init variants of layer_init
    # are not reproduced; only the forward's shape/dtype semantics matter.
    weight = (
        jax.random.normal(k_w, (out_dim, input_dim), dtype=jnp.float32)
        * jnp.sqrt(2.0)
        / jnp.sqrt(input_dim)
    )
    x = jax.random.normal(k_x, (batch, input_dim), dtype=jnp.float32)

    out = custom_linear_et_noisy_forward(x, weight)
    out = jax.block_until_ready(out)

    # Sanity check against plain-JAX reference (out = x @ W.T, no bias).
    ref = x @ weight.T
    assert out.shape == (batch, out_dim)
    assert jnp.allclose(out, ref, atol=1e-5, rtol=1e-5)

    # Also exercise the large-K (3-D grid) path once.
    big_k = 1536
    big_m = 264  # non-multiple of tile to exercise padding
    big_n = 320
    kx2, kw2 = jax.random.split(k_w)
    x2 = jax.random.normal(kx2, (big_m, big_k), dtype=jnp.float32)
    w2 = jax.random.normal(kw2, (big_n, big_k), dtype=jnp.float32) * 0.02
    out2 = jax.block_until_ready(custom_linear_et_noisy_forward(x2, w2))
    ref2 = x2 @ w2.T
    assert out2.shape == (big_m, big_n)
    assert jnp.allclose(out2, ref2, atol=1e-3, rtol=1e-3)

    print("KERNEL_OK")
</pallas_src>

<mosaic_0001>
module attributes {stable_mosaic.version = 11 : i64} {
  func.func @_linear_kernel_2d(%arg0: i32, %arg1: i32, %arg2: memref<8x128xf32, #tpu.memory_space<vmem>>, %arg3: memref<128x128xf32, #tpu.memory_space<vmem>>, %arg4: memref<8x128xf32, #tpu.memory_space<vmem>>) attributes {dimension_semantics = [#tpu.dimension_semantics<parallel>, #tpu.dimension_semantics<parallel>], iteration_bounds = array<i64: 1, 1>, scalar_prefetch = 0 : i64, scratch_operands = 0 : i64, tpu.core_type = #tpu.core_type<tc>, window_params = [{transform_indices = @transform_0, window_bounds = array<i64: 8, 128>}, {transform_indices = @transform_1, window_bounds = array<i64: 128, 128>}, {transform_indices = @transform_2, window_bounds = array<i64: 8, 128>}]} {
    %c0 = arith.constant 0 : index
    %c0_0 = arith.constant 0 : index
    %0 = vector.load %arg2[%c0, %c0_0] : memref<8x128xf32, #tpu.memory_space<vmem>>, vector<8x128xf32>
    %c0_1 = arith.constant 0 : index
    %c0_2 = arith.constant 0 : index
    %1 = vector.load %arg3[%c0_1, %c0_2] : memref<128x128xf32, #tpu.memory_space<vmem>>, vector<128x128xf32>
    %cst = arith.constant dense<0.000000e+00> : vector<8x128xf32>
    %2 = tpu.matmul %0, %1, %cst {dimension_numbers = #tpu.dot_dimension_numbers<[1], [1], [0], [0], [0, 0, 1, 0], [], []>} : vector<8x128xf32>, vector<128x128xf32>, vector<8x128xf32> -> vector<8x128xf32>
    %c0_3 = arith.constant 0 : index
    %c0_4 = arith.constant 0 : index
    %3 = vector.load %arg4[%c0_3, %c0_4] : memref<8x128xf32, #tpu.memory_space<vmem>>, vector<8x128xf32>
    tpu.vector_store %arg4[%c0_3, %c0_4], %2 {strides = array<i32>} : memref<8x128xf32, #tpu.memory_space<vmem>>, vector<8x128xf32>,
    return
  }
  func.func @transform_0(%arg0: i32, %arg1: i32) -> (i32, i32) {
    %c0_i32 = arith.constant 0 : i32
    %c0_i32_0 = arith.constant 0 : i32
    return %arg0, %c0_i32 : i32, i32
  }
  func.func @transform_1(%arg0: i32, %arg1: i32) -> (i32, i32) {
    %c0_i32 = arith.constant 0 : i32
    %c0_i32_0 = arith.constant 0 : i32
    return %arg1, %c0_i32 : i32, i32
  }
  func.func @transform_2(%arg0: i32, %arg1: i32) -> (i32, i32) {
    %c0_i32 = arith.constant 0 : i32
    return %arg0, %arg1 : i32, i32
  }
}

</mosaic_0001>

<llo_original>
// kernel: custom_linear_et_noisy_forward.1
$region0: #{custom_linear_et_noisy_forward.1}
  #allocation0 [shape = 'u32[]', space=smem, size = 0x4, offset = 0x4, fixed_abs, tag = 'smem constant byte address 0x4 - core index']
  #allocation1 [shape = 'u32[144,128]{1,0:T(1,128)}', space=vmem, size = 0x12000, scoped, tag = 'internal scratch']
  %s0 = inlined_call_operand.vmem [shape: f32[8,128], index: 0, kind: input, shape index: {}]
  %s1 = inlined_call_operand.vmem [shape: f32[128,128], index: 1, kind: input, shape index: {}]
  %s2 = inlined_call_operand.hbm [shape: f32[8,128], index: 2, kind: output, shape index: {}]
  %s3 = sld [smem:[#allocation0]]
  $region18: #{custom_linear_et_noisy_forward.1} parent=0
    _
  %s5 = ssub.s32 1, %s3
  %s6 = scalar_select 0, %s5, %s3
  $region1: #{custom_linear_et_noisy_forward.1} parent=0
    #allocation2 [shape = 'u8[4096]{0}', space=vmem, size = 0x1000, scoped, tag = 'output window, operand 0, single buffered']
    #allocation3 [shape = 's32[1]{0}', space=sflag, size = 0x4, scoped, tag = 'scoped memory for custom_linear_et_noisy_forward.1']
    %7 = vsyncpa [#allocation3], 0
    // Predicated region
    $region2: #{custom_linear_et_noisy_forward.1} parent=1 // pred_check
      _
    $region3: #{custom_linear_et_noisy_forward.1} parent=1 // pred_check_branch
      %9 = sbr.rel (0) target = $region5
    $region4: #{custom_linear_et_noisy_forward.1} parent=1 // pred_region
      _
    $region5: #{custom_linear_et_noisy_forward.1} parent=1 // pred_fallthru
      _
    // Predicated region
    $region6: #{custom_linear_et_noisy_forward.1} parent=1 // pred_check
      _
    $region7: #{custom_linear_et_noisy_forward.1} parent=1 // pred_check_branch
      %11 = sbr.rel (0) target = $region9
    $region8: #{custom_linear_et_noisy_forward.1} parent=1 // pred_region
      _
    $region9: #{custom_linear_et_noisy_forward.1} parent=1 // pred_fallthru
      _
    %v12 = vld [vmem:[%s0] sm:$0xff]
    %v13 = vld [vmem:[%s1] sm:$0xff]
    %v14 = vld [vmem:[%s1 + $0x8] sm:$0xff]
    %v15 = vld [vmem:[%s1 + $0x10] sm:$0xff]
    %v16 = vld [vmem:[%s1 + $0x18] sm:$0xff]
    %v17 = vld [vmem:[%s1 + $0x20] sm:$0xff]
    %v18 = vld [vmem:[%s1 + $0x28] sm:$0xff]
    %v19 = vld [vmem:[%s1 + $0x30] sm:$0xff]
    %v20 = vld [vmem:[%s1 + $0x38] sm:$0xff]
    %v21 = vld [vmem:[%s1 + $0x40] sm:$0xff]
    %v22 = vld [vmem:[%s1 + $0x48] sm:$0xff]
    %v23 = vld [vmem:[%s1 + $0x50] sm:$0xff]
    %v24 = vld [vmem:[%s1 + $0x58] sm:$0xff]
    %v25 = vld [vmem:[%s1 + $0x60] sm:$0xff]
    %v26 = vld [vmem:[%s1 + $0x68] sm:$0xff]
    %v27 = vld [vmem:[%s1 + $0x70] sm:$0xff]
    %v28 = vld [vmem:[%s1 + $0x78] sm:$0xff]
    %29 = vmatprep.subr.mxu0 0.0
    %30 = vmatpush1.xpose.msra.mxu0 %v13
    %31 = vmatprep.subr.mxu0 0.0
    %32 = vmatpush1.xpose.msra.mxu0 %v14
    %33 = vmatprep.subr.mxu0 0.0
    %34 = vmatpush1.xpose.msra.mxu0 %v15
    %35 = vmatprep.subr.mxu0 0.0
    %36 = vmatpush1.xpose.msra.mxu0 %v16
    %37 = vmatprep.subr.mxu0 0.0
    %38 = vmatpush1.xpose.msra.mxu0 %v17
    %39 = vmatprep.subr.mxu0 0.0
    %40 = vmatpush1.xpose.msra.mxu0 %v18
    %41 = vmatprep.subr.mxu0 0.0
    %42 = vmatpush1.xpose.msra.mxu0 %v19
    %43 = vmatprep.subr.mxu0 0.0
    %44 = vmatpush1.xpose.msra.mxu0 %v20
    %45 = vmatprep.subr.mxu0 0.0
    %46 = vmatpush1.xpose.msra.mxu0 %v21
    %47 = vmatprep.subr.mxu0 0.0
    %48 = vmatpush1.xpose.msra.mxu0 %v22
    %49 = vmatprep.subr.mxu0 0.0
    %50 = vmatpush1.xpose.msra.mxu0 %v23
    %51 = vmatprep.subr.mxu0 0.0
    %52 = vmatpush1.xpose.msra.mxu0 %v24
    %53 = vmatprep.subr.mxu0 0.0
    %54 = vmatpush1.xpose.msra.mxu0 %v25
    %55 = vmatprep.subr.mxu0 0.0
    %56 = vmatpush1.xpose.msra.mxu0 %v26
    %57 = vmatprep.subr.mxu0 0.0
    %58 = vmatpush1.xpose.msra.mxu0 %v27
    %59 = vmatprep.subr.mxu0 0.0
    %60 = vmatpush1.xpose.msra.mxu0 %v28
    %61 = vmatprep.subr.mxu0 0.0
    %62 = vmatpush1.xpose.msra.mxu0 0.0
    %63 = vmatprep.subr.mxu0 0.0
    %64 = vmatpush1.xpose.msra.mxu0 0.0
    %65 = vmatprep.subr.mxu0 0.0
    %66 = vmatpush1.xpose.msra.mxu0 0.0
    %67 = vmatprep.subr.mxu0 0.0
    %68 = vmatpush1.xpose.msra.mxu0 0.0
    %69 = vmatprep.subr.mxu0 0.0
    %70 = vmatpush1.xpose.msra.mxu0 0.0
    %71 = vmatprep.subr.mxu0 0.0
    %72 = vmatpush1.xpose.msra.mxu0 0.0
    %73 = vmatprep.subr.mxu0 0.0
    %74 = vmatpush1.xpose.msra.mxu0 0.0
    %75 = vmatprep.subr.mxu0 0.0
    %76 = vmatpush1.xpose.msra.mxu0 0.0
    %77 = vmatprep.subr.mxu0 0.0
    %78 = vmatpush1.xpose.msra.mxu0 0.0
    %79 = vmatprep.subr.mxu0 0.0
    %80 = vmatpush1.xpose.msra.mxu0 0.0
    %81 = vmatprep.subr.mxu0 0.0
    %82 = vmatpush1.xpose.msra.mxu0 0.0
    %83 = vmatprep.subr.mxu0 0.0
    %84 = vmatpush1.xpose.msra.mxu0 0.0
    %85 = vmatprep.subr.mxu0 0.0
    %86 = vmatpush1.xpose.msra.mxu0 0.0
    %87 = vmatprep.subr.mxu0 0.0
    %88 = vmatpush1.xpose.msra.mxu0 0.0
    %89 = vmatprep.subr.mxu0 0.0
    %90 = vmatpush1.xpose.msra.mxu0 0.0
    %91 = vmatprep.subr.mxu0 0.0
    %92 = vmatpush1.xpose.msra.mxu0 0.0
    %93 = vmatprep.mubr.f32.mxu0 0.0
    %94 = vmatmul.mubr.f32.gmra.mrb[0].mxu0 %v12
    %v95 = vpop.f32.mrb[0].mxu0
    %v96 = vadd.f32 0.0, %v95
    %v97 = vpop.f32.mrb[0].mxu0
    %98 = vdwg.mxu0
    %99 = vst [vmem:[#allocation2] sm:$0xff] %v96
    // Predicated region
    $region10: #{custom_linear_et_noisy_forward.1} parent=1 // pred_check
      _
    $region11: #{custom_linear_et_noisy_forward.1} parent=1 // pred_check_branch
      %101 = sbr.rel (0) target = $region13
    $region12: #{custom_linear_et_noisy_forward.1} parent=1 // pred_region
      %s103 = ssub.s32 128, 128
      %104 = vsyncadd [#allocation3], %s103
      %s106 = sshll.u32 [#allocation2], 4
      %s107 = int_to_ptr.vmem [resolvable:$true] %s106
      %109 = dma.vmem_to_hbm [thread:$0]  %s107, 128, %s2, [#allocation3]
    $region13: #{custom_linear_et_noisy_forward.1} parent=1 // pred_fallthru
      _
    // Predicated region
    $region14: #{custom_linear_et_noisy_forward.1} parent=1 // pred_check
      _
    $region15: #{custom_linear_et_noisy_forward.1} parent=1 // pred_check_branch
      %111 = sbr.rel (0) target = $region17
    $region16: #{custom_linear_et_noisy_forward.1} parent=1 // pred_region
      %112 = dma.done [#allocation3], 128
    $region17: #{custom_linear_et_noisy_forward.1} parent=1 // pred_fallthru
      _
    %113 = vsyncpa [#allocation3], 1

</llo_original>
